<compile_context>
chip_gen: v7x
topology: tpu7x:2x2x1
jax: 0.10.0
libtpu: 0.0.40
codegen_flags: <defaults>
</compile_context>

<pallas_src>
import jax
import jax.numpy as jnp
from jax.experimental import pallas as pl
from jax.experimental.pallas import tpu as pltpu


def _round_up(x, m):
    return (x + m - 1) // m * m


def _make_bigram_kernel(tm, n_tokens, v_true, v_pad, emit_logits, emit_loss):
    """Build the kernel for a static (tile, output-set) configuration."""
    needs_col_mask = v_pad != v_true

    def kernel(tok_ref, emb_ref, *out_refs):
        outs = iter(out_refs)
        logits_ref = next(outs) if emit_logits else None
        loss_ref = next(outs) if emit_loss else None

        # lane iota over the (padded) vocab axis
        col = jax.lax.broadcasted_iota(jnp.int32, (tm, v_pad), 1)

        # Embedding lookup as one-hot matmul on the MXU: (tm,Vp)@(Vp,Vp)->(tm,Vp).
        # Exact gather in f32.  For a large vocab, replace with a VMEM sublane
        # gather (jnp.take on emb_ref) or a scalar-prefetched row gather to
        # avoid O(tm*V^2) FLOPs and the O(V^2) resident table.
        idx = tok_ref[:, 0:1]                                   # (tm, 1)
        onehot_idx = (idx == col).astype(jnp.float32)
        logits = jnp.dot(onehot_idx, emb_ref[...],
                         preferred_element_type=jnp.float32)

        if emit_logits:
            logits_ref[...] = logits

        if emit_loss:
            tgt = tok_ref[:, 1:2]                               # (tm, 1)
            # Row-wise cross entropy: logsumexp(logits) - logits[target]
            if needs_col_mask:
                masked = jnp.where(col < v_true, logits, jnp.float32(-1e30))
            else:
                masked = logits
            m = jnp.max(masked, axis=-1, keepdims=True)
            lse = jnp.log(jnp.sum(jnp.exp(masked - m), axis=-1,
                                  keepdims=True)) + m
            onehot_tgt = (tgt == col).astype(jnp.float32)
            tgt_logit = jnp.sum(onehot_tgt * logits, axis=-1, keepdims=True)
            ce = lse - tgt_logit                                # (tm, 1)

            # Mask padded token rows in-kernel so the wrapper can sum the
            # whole output without slicing.
            row = (pl.program_id(0) * tm
                   + jax.lax.broadcasted_iota(jnp.int32, (tm, 1), 0))
            loss_ref[...] = jnp.where(row < n_tokens, ce, jnp.float32(0.0))

    return kernel


def bigram_forward(idx, target, emb, *, tm=1024, return_logits=True):
    """Pallas forward of BigramModel.

    Args:
      idx:    (B, T) int token ids.
      target: (B, T) int token ids, or None.
      emb:    (V, V) float32 embedding table.
      tm:     max token-tile size (rows per grid step).
      return_logits: if False (and target is given), skip the (N, V) logits
        HBM writeback entirely and return (None, loss) -- the typical
        training-step use.
    Returns:
      (logits (B, T, V) float32 or None, loss scalar float32 or None)
    """
    B, T = idx.shape
    V = emb.shape[0]
    N = B * T

    has_target = target is not None
    emit_loss = has_target
    emit_logits = return_logits or not has_target   # always produce something

    # Pad vocab (lane) axis to a multiple of 128 if needed.
    V_pad = _round_up(V, 128)
    if V_pad != V:
        emb = jnp.pad(emb, ((0, V_pad - V), (0, V_pad - V)))

    # Token tile: as large as VMEM comfortably allows (amortizes the ~0.35 us
    # per-grid-step overhead, lane-dense logits stores), clamped for tiny
    # inputs.  When there are enough tokens, cap the tile so the grid has at
    # least 2 steps -> the "parallel" axis shards across v7x's two TCs.
    tm_eff = max(8, min(tm, _round_up(N, 8)))
    tm_eff = _round_up(tm_eff, 8)
    if N >= 512:
        half = _round_up(-(-N // 2), 256)       # ceil(N/2) rounded to 256
        tm_eff = _round_up(min(tm_eff, half), 8)
    N_pad = _round_up(N, tm_eff)
    G = N_pad // tm_eff

    # Fuse idx (+ target) into one (N_pad, tok_w) int32 input: one tile DMA
    # per grid step instead of two.
    idx_flat = jnp.pad(idx.reshape(N).astype(jnp.int32), (0, N_pad - N))
    if emit_loss:
        tgt_flat = jnp.pad(target.reshape(N).astype(jnp.int32), (0, N_pad - N))
        tok = jnp.stack([idx_flat, tgt_flat], axis=-1)          # (N_pad, 2)
    else:
        tok = idx_flat.reshape(N_pad, 1)                        # (N_pad, 1)
    tok_w = tok.shape[1]

    # Scoped-VMEM budget: logits output double buffers (if emitted), the
    # grid-invariant emb buffers, small token/loss tiles, plus the
    # Mosaic-materialized VPU intermediates (col iota, two one-hots, masked,
    # exp, logits) ~ 7 tiles of (tm, V_pad) f32, plus headroom.  Floor at the
    # 32 MiB default, cap below v7x's 64 MiB physical VMEM.
    vmem_needed = ((2 * tm_eff * V_pad * 4 if emit_logits else 0)
                   + 7 * tm_eff * V_pad * 4        # VPU intermediates
                   + 2 * V_pad * V_pad * 4         # embedding table buffers
                   + 2 * tm_eff * tok_w * 4        # token tiles
                   + 2 * tm_eff * 4                # per-token loss tiles
                   + (2 << 20))                    # headroom
    vmem_limit = min(max(vmem_needed, 32 << 20), 48 << 20)

    kernel = _make_bigram_kernel(tm_eff, N, V, V_pad, emit_logits, emit_loss)

    out_shape = []
    out_specs = []
    if emit_logits:
        out_shape.append(jax.ShapeDtypeStruct((N_pad, V_pad), jnp.float32))
        out_specs.append(pl.BlockSpec((tm_eff, V_pad), lambda i: (i, 0)))
    if emit_loss:
        out_shape.append(jax.ShapeDtypeStruct((N_pad, 1), jnp.float32))
        out_specs.append(pl.BlockSpec((tm_eff, 1), lambda i: (i, 0)))

    outs = pl.pallas_call(
        kernel,
        out_shape=tuple(out_shape),
        grid_spec=pltpu.PrefetchScalarGridSpec(
            num_scalar_prefetch=0,
            grid=(G,),
            in_specs=[
                pl.BlockSpec((tm_eff, tok_w), lambda i: (i, 0)),   # idx(+tgt)
                # Grid-invariant block: Pallas skips the re-fetch across steps.
                # For a large vocab, hoist into a single manually-DMA'd VMEM
                # scratch instead and re-derive the budget against 64 MiB.
                pl.BlockSpec((V_pad, V_pad), lambda i: (0, 0)),    # emb
            ],
            out_specs=out_specs),
        compiler_params=pltpu.CompilerParams(
            dimension_semantics=("parallel",),
            vmem_limit_bytes=vmem_limit),
    )(tok, emb)

    o = iter(outs)
    logits = None
    if emit_logits:
        logits_flat = next(o)
        if return_logits:
            logits = logits_flat[:N, :V].reshape(B, T, V)
    loss = None
    if emit_loss:
        tok_loss = next(o)
        loss = jnp.sum(tok_loss) / jnp.float32(N)   # padded rows are zeroed in-kernel
    return logits, loss


def _reference(idx, target, emb):
    V = emb.shape[0]
    logits = emb[idx]
    flat = logits.reshape(-1, V)
    lse = jax.nn.logsumexp(flat, axis=-1)
    loss = jnp.mean(lse - flat[jnp.arange(flat.shape[0]), target.reshape(-1)])
    return logits, loss


if __name__ == "__main__":
    vocab_size = 128
    B, T = 2, 8

    key = jax.random.PRNGKey(0)
    k_emb, k_idx, k_tgt, k_idx2, k_tgt2 = jax.random.split(key, 5)

    # Deterministic parameter init (nn.Embedding default ~ N(0, 1)).
    emb = jax.random.normal(k_emb, (vocab_size, vocab_size), dtype=jnp.float32)
    idx = jax.random.randint(k_idx, (B, T), 0, vocab_size, dtype=jnp.int32)
    target = jax.random.randint(k_tgt, (B, T), 0, vocab_size, dtype=jnp.int32)

    # 1) Full forward: logits + loss.
    logits, loss = bigram_forward(idx, target, emb)
    jax.block_until_ready((logits, loss))

    # 2) Inference path: target=None -> (logits, None), CE path compiled out.
    logits_nt, loss_nt = bigram_forward(idx, None, emb)
    jax.block_until_ready(logits_nt)

    # 3) Loss-only path: logits never written to HBM.
    logits_lo, loss_lo = bigram_forward(idx, target, emb, return_logits=False)
    jax.block_until_ready(loss_lo)

    ref_logits, ref_loss = _reference(idx, target, emb)
    assert logits.shape == (B, T, vocab_size)
    assert jnp.allclose(logits, ref_logits, atol=1e-5)
    assert jnp.allclose(loss, ref_loss, atol=1e-4)
    assert loss_nt is None
    assert jnp.allclose(logits_nt, ref_logits, atol=1e-5)
    assert logits_lo is None
    assert jnp.allclose(loss_lo, ref_loss, atol=1e-4)

    # 4) Multi-tile case (exercises grid > 1, token padding + in-kernel mask).
    B2, T2 = 3, 96                      # N = 288 -> 3 tiles of 128 (padded)
    idx2 = jax.random.randint(k_idx2, (B2, T2), 0, vocab_size, dtype=jnp.int32)
    tgt2 = jax.random.randint(k_tgt2, (B2, T2), 0, vocab_size, dtype=jnp.int32)
    logits2, loss2 = bigram_forward(idx2, tgt2, emb, tm=128)
    jax.block_until_ready((logits2, loss2))
    ref_logits2, ref_loss2 = _reference(idx2, tgt2, emb)
    assert jnp.allclose(logits2, ref_logits2, atol=1e-5)
    assert jnp.allclose(loss2, ref_loss2, atol=1e-4)
    _, loss2_lo = bigram_forward(idx2, tgt2, emb, tm=128, return_logits=False)
    assert jnp.allclose(loss2_lo, ref_loss2, atol=1e-4)

    print("KERNEL_OK")
</pallas_src>

<mosaic_0001>
module attributes {stable_mosaic.version = 11 : i64} {
  func.func @kernel(%arg0: i32, %arg1: memref<16x2xi32, #tpu.memory_space<vmem>>, %arg2: memref<128x128xf32, #tpu.memory_space<vmem>>, %arg3: memref<16x128xf32, #tpu.memory_space<vmem>>, %arg4: memref<16x1xf32, #tpu.memory_space<vmem>>) attributes {dimension_semantics = [#tpu.dimension_semantics<parallel>], iteration_bounds = array<i64: 1>, scalar_prefetch = 0 : i64, scratch_operands = 0 : i64, tpu.core_type = #tpu.core_type<tc>, window_params = [{transform_indices = @transform_0, window_bounds = array<i64: 16, 2>}, {pipeline_mode = #tpu.pipeline_mode<synchronous>, transform_indices = @transform_1, window_bounds = array<i64: 128, 128>}, {transform_indices = @transform_2, window_bounds = array<i64: 16, 128>}, {transform_indices = @transform_3, window_bounds = array<i64: 16, 1>}]} {
    %0 = tpu.iota {dimensions = array<i32: 1>} : vector<16x128xi32>
    %c0 = arith.constant 0 : index
    %c0_0 = arith.constant 0 : index
    %1 = vector.load %arg1[%c0, %c0_0] : memref<16x2xi32, #tpu.memory_space<vmem>>, vector<16x1xi32>
    %2 = vector.broadcast %1 : vector<16x1xi32> to vector<16x128xi32>
    %3 = arith.cmpi eq, %2, %0 : vector<16x128xi32>
    %4 = arith.extui %3 : vector<16x128xi1> to vector<16x128xi32>
    %5 = arith.sitofp %4 : vector<16x128xi32> to vector<16x128xf32>
    %c0_1 = arith.constant 0 : index
    %c0_2 = arith.constant 0 : index
    %6 = vector.load %arg2[%c0_1, %c0_2] : memref<128x128xf32, #tpu.memory_space<vmem>>, vector<128x128xf32>
    %cst = arith.constant dense<0.000000e+00> : vector<16x128xf32>
    %7 = tpu.matmul %5, %6, %cst {dimension_numbers = #tpu.dot_dimension_numbers<[1], [0], [0], [1], [0, 0, 1, 1], [], []>} : vector<16x128xf32>, vector<128x128xf32>, vector<16x128xf32> -> vector<16x128xf32>
    %c0_3 = arith.constant 0 : index
    %c0_4 = arith.constant 0 : index
    %8 = vector.load %arg3[%c0_3, %c0_4] : memref<16x128xf32, #tpu.memory_space<vmem>>, vector<16x128xf32>
    tpu.vector_store %arg3[%c0_3, %c0_4], %7 {strides = array<i32>} : memref<16x128xf32, #tpu.memory_space<vmem>>, vector<16x128xf32>,
    %c0_5 = arith.constant 0 : index
    %c1 = arith.constant 1 : index
    %9 = vector.load %arg1[%c0_5, %c1] : memref<16x2xi32, #tpu.memory_space<vmem>>, vector<16x1xi32>
    %cst_6 = arith.constant dense<0xFF800000> : vector<16xf32>
    %10 = vector.multi_reduction <maximumf>, %7, %cst_6 [1] : vector<16x128xf32> to vector<16xf32>
    %11 = vector.shape_cast %10 : vector<16xf32> to vector<16x1xf32>
    %12 = vector.broadcast %11 : vector<16x1xf32> to vector<16x128xf32>
    %13 = arith.subf %7, %12 : vector<16x128xf32>
    %14 = math.exp %13 : vector<16x128xf32>
    %cst_7 = arith.constant dense<0.000000e+00> : vector<16xf32>
    %15 = vector.multi_reduction <add>, %14, %cst_7 [1] : vector<16x128xf32> to vector<16xf32>
    %16 = vector.shape_cast %15 : vector<16xf32> to vector<16x1xf32>
    %17 = math.log %16 : vector<16x1xf32>
    %18 = arith.addf %17, %11 : vector<16x1xf32>
    %19 = vector.broadcast %9 : vector<16x1xi32> to vector<16x128xi32>
    %20 = arith.cmpi eq, %19, %0 : vector<16x128xi32>
    %21 = arith.extui %20 : vector<16x128xi1> to vector<16x128xi32>
    %22 = arith.sitofp %21 : vector<16x128xi32> to vector<16x128xf32>
    %23 = arith.mulf %22, %7 : vector<16x128xf32>
    %cst_8 = arith.constant dense<0.000000e+00> : vector<16xf32>
    %24 = vector.multi_reduction <add>, %23, %cst_8 [1] : vector<16x128xf32> to vector<16xf32>
    %25 = vector.shape_cast %24 : vector<16xf32> to vector<16x1xf32>
    %26 = arith.subf %18, %25 : vector<16x1xf32>
    %c16_i32 = arith.constant 16 : i32
    %27 = arith.muli %arg0, %c16_i32 : i32
    %28 = tpu.iota {dimensions = array<i32: 0>} : vector<16x1xi32>
    %29 = vector.broadcast %27 : i32 to vector<16x1xi32>
    %30 = arith.addi %29, %28 : vector<16x1xi32>
    %c16_i32_9 = arith.constant 16 : i32
    %31 = vector.broadcast %c16_i32_9 : i32 to vector<16x1xi32>
    %32 = arith.cmpi slt, %30, %31 : vector<16x1xi32>
    %cst_10 = arith.constant 0.000000e+00 : f32
    %33 = vector.broadcast %cst_10 : f32 to vector<16x1xf32>
    %34 = arith.select %32, %26, %33 : vector<16x1xi1>, vector<16x1xf32>
    %c0_11 = arith.constant 0 : index
    %c0_12 = arith.constant 0 : index
    %35 = vector.load %arg4[%c0_11, %c0_12] : memref<16x1xf32, #tpu.memory_space<vmem>>, vector<16x1xf32>
    tpu.vector_store %arg4[%c0_11, %c0_12], %34 {strides = array<i32>} : memref<16x1xf32, #tpu.memory_space<vmem>>, vector<16x1xf32>,
    return
  }
  func.func @transform_0(%arg0: i32) -> (i32, i32) {
    %c0_i32 = arith.constant 0 : i32
    %c0_i32_0 = arith.constant 0 : i32
    return %arg0, %c0_i32 : i32, i32
  }
  func.func @transform_1(%arg0: i32) -> (i32, i32) {
    %c0_i32 = arith.constant 0 : i32
    %c0_i32_0 = arith.constant 0 : i32
    %c0_i32_1 = arith.constant 0 : i32
    return %c0_i32, %c0_i32_0 : i32, i32
  }
  func.func @transform_2(%arg0: i32) -> (i32, i32) {
    %c0_i32 = arith.constant 0 : i32
    %c0_i32_0 = arith.constant 0 : i32
    return %arg0, %c0_i32 : i32, i32
  }
  func.func @transform_3(%arg0: i32) -> (i32, i32) {
    %c0_i32 = arith.constant 0 : i32
    %c0_i32_0 = arith.constant 0 : i32
    return %arg0, %c0_i32 : i32, i32
  }
}

</mosaic_0001>

<llo_original>
// kernel: tpu_custom_call.1
$region0: #{tpu_custom_call.1}
  #allocation0 [shape = 'u32[]', space=smem, size = 0x4, offset = 0x4, fixed_abs, tag = 'smem constant byte address 0x4 - core index']
  #allocation1 [shape = 'u32[144,128]{1,0:T(1,128)}', space=vmem, size = 0x12000, scoped, tag = 'internal scratch']
  %s0 = inlined_call_operand.vmem [shape: s32[16,2], index: 0, kind: input, shape index: {}]
  %s1 = inlined_call_operand.hbm [shape: f32[128,128], index: 1, kind: input, shape index: {}]
  %s2 = inlined_call_operand.hbm [shape: f32[16,128], index: 2, kind: output, shape index: {0}]
  %s3 = inlined_call_operand.vmem [shape: f32[16,1], index: 3, kind: output, shape index: {1}]
  %4 = xla_tuple %s2, %s3
  %s5 = sld [smem:[#allocation0]]
  $region30: #{tpu_custom_call.1} parent=0
    _
  %s7 = ssub.s32 1, %s5
  %s8 = scalar_select 0, %s7, %s5
  $region1: #{tpu_custom_call.1} parent=0
    #allocation2 [shape = 'u8[65536]{0}', space=vmem, size = 0x10000, scoped, tag = 'input window, operand 1, single buffered']
    #allocation3 [shape = 's32[1]{0}', space=sflag, size = 0x4, scoped, tag = 'scoped memory for tpu_custom_call.1']
    #allocation4 [shape = 's32[1]{0}', space=sflag, size = 0x4, scoped, tag = 'scoped memory for tpu_custom_call.1']
    #allocation5 [shape = 'u8[8192]{0}', space=vmem, size = 0x2000, scoped, tag = 'output window, operand 0, single buffered']
    %9 = vsyncpa [#allocation3], 0
    %10 = vsyncpa [#allocation4], 0
    // Predicated region
    $region2: #{tpu_custom_call.1} parent=1 // pred_check
      _
    $region3: #{tpu_custom_call.1} parent=1 // pred_check_branch
      %12 = sbr.rel (0) target = $region5
    $region4: #{tpu_custom_call.1} parent=1 // pred_region
      _
    $region5: #{tpu_custom_call.1} parent=1 // pred_fallthru
      _
    // Predicated region
    $region6: #{tpu_custom_call.1} parent=1 // pred_check
      _
    $region7: #{tpu_custom_call.1} parent=1 // pred_check_branch
      %14 = sbr.rel (0) target = $region9
    $region8: #{tpu_custom_call.1} parent=1 // pred_region
      %s16 = ssub.s32 2048, 2048
      %17 = vsyncadd [#allocation3], %s16
      %s18 = sshll.u32 [#allocation2], 4
      %s19 = int_to_ptr.vmem [resolvable:$true] %s18
      %24 = dma.hbm_to_vmem [thread:$0]  %s1, 2048, %s19, [#allocation3], 128, 128, 8
    $region9: #{tpu_custom_call.1} parent=1 // pred_fallthru
      _
    // Predicated region
    $region10: #{tpu_custom_call.1} parent=1 // pred_check
      _
    $region11: #{tpu_custom_call.1} parent=1 // pred_check_branch
      %26 = sbr.rel (0) target = $region13
    $region12: #{tpu_custom_call.1} parent=1 // pred_region
      %27 = dma.done [#allocation3], 2048
    $region13: #{tpu_custom_call.1} parent=1 // pred_fallthru
      _
    %v28 = vlaneseq
    %v29 = vand.u32 %v28, 127
    %v30 = vld [vmem:[%s0] sm:$0xff]
    %v31 = vld [vmem:[%s0 + $0x8] sm:$0xff]
    %32 = vset.pattern.permute.xlu0 0
    %33 = vperm.xlu0 %32, %v30
    %v34 = vpop.permute.xlu0 %33
    %35 = vset.pattern.permute.xlu0 0
    %36 = vperm.xlu0 %35, %v31
    %v37 = vpop.permute.xlu0 %36
    %vm38 = vcmp.eq.s32.totalorder %v34, %v29
    %vm39 = vcmp.eq.s32.totalorder %v37, %v29
    %v40 = vsel %vm38, 1, 0
    %v41 = vsel %vm39, 1, 0
    %v42 = vcvt.s32.f32 %v40
    %v43 = vcvt.s32.f32 %v41
    %v44 = vld [vmem:[#allocation2] sm:$0xff]
    %v45 = vld [vmem:[#allocation2 + $0x8] sm:$0xff]
    %v46 = vld [vmem:[#allocation2 + $0x10] sm:$0xff]
    %v47 = vld [vmem:[#allocation2 + $0x18] sm:$0xff]
    %v48 = vld [vmem:[#allocation2 + $0x20] sm:$0xff]
    %v49 = vld [vmem:[#allocation2 + $0x28] sm:$0xff]
    %v50 = vld [vmem:[#allocation2 + $0x30] sm:$0xff]
    %v51 = vld [vmem:[#allocation2 + $0x38] sm:$0xff]
    %v52 = vld [vmem:[#allocation2 + $0x40] sm:$0xff]
    %v53 = vld [vmem:[#allocation2 + $0x48] sm:$0xff]
    %v54 = vld [vmem:[#allocation2 + $0x50] sm:$0xff]
    %v55 = vld [vmem:[#allocation2 + $0x58] sm:$0xff]
    %v56 = vld [vmem:[#allocation2 + $0x60] sm:$0xff]
    %v57 = vld [vmem:[#allocation2 + $0x68] sm:$0xff]
    %v58 = vld [vmem:[#allocation2 + $0x70] sm:$0xff]
    %v59 = vld [vmem:[#allocation2 + $0x78] sm:$0xff]
    %60 = vmatprep.subr.mxu0 0.0
    %61 = vmatpush1.msra.mxu0 %v44
    %62 = vmatprep.subr.mxu0 0.0
    %63 = vmatpush1.msra.mxu0 %v45
    %64 = vmatprep.subr.mxu0 0.0
    %65 = vmatpush1.msra.mxu0 %v46
    %66 = vmatprep.subr.mxu0 0.0
    %67 = vmatpush1.msra.mxu0 %v47
    %68 = vmatprep.subr.mxu0 0.0
    %69 = vmatpush1.msra.mxu0 %v48
    %70 = vmatprep.subr.mxu0 0.0
    %71 = vmatpush1.msra.mxu0 %v49
    %72 = vmatprep.subr.mxu0 0.0
    %73 = vmatpush1.msra.mxu0 %v50
    %74 = vmatprep.subr.mxu0 0.0
    %75 = vmatpush1.msra.mxu0 %v51
    %76 = vmatprep.subr.mxu0 0.0
    %77 = vmatpush1.msra.mxu0 %v52
    %78 = vmatprep.subr.mxu0 0.0
    %79 = vmatpush1.msra.mxu0 %v53
    %80 = vmatprep.subr.mxu0 0.0
    %81 = vmatpush1.msra.mxu0 %v54
    %82 = vmatprep.subr.mxu0 0.0
    %83 = vmatpush1.msra.mxu0 %v55
    %84 = vmatprep.subr.mxu0 0.0
    %85 = vmatpush1.msra.mxu0 %v56
    %86 = vmatprep.subr.mxu0 0.0
    %87 = vmatpush1.msra.mxu0 %v57
    %88 = vmatprep.subr.mxu0 0.0
    %89 = vmatpush1.msra.mxu0 %v58
    %90 = vmatprep.subr.mxu0 0.0
    %91 = vmatpush1.msra.mxu0 %v59
    %92 = vmatprep.subr.mxu0 0.0
    %93 = vmatpush1.msra.mxu0 0.0
    %94 = vmatprep.subr.mxu0 0.0
    %95 = vmatpush1.msra.mxu0 0.0
    %96 = vmatprep.subr.mxu0 0.0
    %97 = vmatpush1.msra.mxu0 0.0
    %98 = vmatprep.subr.mxu0 0.0
    %99 = vmatpush1.msra.mxu0 0.0
    %100 = vmatprep.subr.mxu0 0.0
    %101 = vmatpush1.msra.mxu0 0.0
    %102 = vmatprep.subr.mxu0 0.0
    %103 = vmatpush1.msra.mxu0 0.0
    %104 = vmatprep.subr.mxu0 0.0
    %105 = vmatpush1.msra.mxu0 0.0
    %106 = vmatprep.subr.mxu0 0.0
    %107 = vmatpush1.msra.mxu0 0.0
    %108 = vmatprep.subr.mxu0 0.0
    %109 = vmatpush1.msra.mxu0 0.0
    %110 = vmatprep.subr.mxu0 0.0
    %111 = vmatpush1.msra.mxu0 0.0
    %112 = vmatprep.subr.mxu0 0.0
    %113 = vmatpush1.msra.mxu0 0.0
    %114 = vmatprep.subr.mxu0 0.0
    %115 = vmatpush1.msra.mxu0 0.0
    %116 = vmatprep.subr.mxu0 0.0
    %117 = vmatpush1.msra.mxu0 0.0
    %118 = vmatprep.subr.mxu0 0.0
    %119 = vmatpush1.msra.mxu0 0.0
    %120 = vmatprep.subr.mxu0 0.0
    %121 = vmatpush1.msra.mxu0 0.0
    %122 = vmatprep.subr.mxu0 0.0
    %123 = vmatpush1.msra.mxu0 0.0
    %124 = vmatprep.mubr.f32.mxu0 0.0
    %125 = vmatmul.mubr.f32.gmra.mrb[0].mxu0 %v42
    %v126 = vpop.f32.mrb[0].mxu0
    %v127 = vadd.f32 0.0, %v126
    %v128 = vpop.f32.mrb[0].mxu0
    %129 = vmatprep.mubr.f32.mxu0 0.0
    %130 = vmatmul.mubr.f32.gmra.mrb[0].mxu0 %v43
    %v131 = vpop.f32.mrb[0].mxu0
    %v132 = vadd.f32 0.0, %v131
    %v133 = vpop.f32.mrb[0].mxu0
    %134 = vdwg.mxu0
    %135 = vst [vmem:[#allocation5] sm:$0xff] %v127
    %136 = vst [vmem:[#allocation5 + $0x8] sm:$0xff] %v132
    %v137 = vld [vmem:[%s0] sm:$0xff]
    %v138 = vld [vmem:[%s0 + $0x8] sm:$0xff]
    %139 = vmax.xlane.f32.xlu0 %v127
    %v140 = vpop.xlane.xlu0 %139
    %141 = vmax.xlane.f32.xlu0 %v132
    %v142 = vpop.xlane.xlu0 %141
    %v143 = vsub.f32 %v127, %v140
    %v144 = vsub.f32 %v132, %v142
    %v145 = vmul.f32 %v143, 1.442695
    %v146 = vpow.pop %v145
    %v147 = vmul.f32 %v144, 1.442695
    %v148 = vpow.pop %v147
    %149 = vadd.xlane.f32.xlu0 %v146
    %v150 = vpop.xlane.xlu0 %149
    %151 = vadd.xlane.f32.xlu0 %v148
    %v152 = vpop.xlane.xlu0 %151
    %v153 = vlog2.pop %v150
    %v154 = vmul.f32 %v153, 0.6931472
    %v155 = vlog2.pop %v152
    %v156 = vmul.f32 %v155, 0.6931472
    %v157 = vadd.f32 %v154, %v140
    %v158 = vadd.f32 %v156, %v142
    %159 = vset.pattern.permute.xlu0 1
    %160 = vperm.xlu0 %159, %v137
    %v161 = vpop.permute.xlu0 %160
    %162 = vset.pattern.permute.xlu0 1
    %163 = vperm.xlu0 %162, %v138
    %v164 = vpop.permute.xlu0 %163
    %vm165 = vcmp.eq.s32.totalorder %v161, %v29
    %vm166 = vcmp.eq.s32.totalorder %v164, %v29
    %v167 = vsel %vm165, 1, 0
    %v168 = vsel %vm166, 1, 0
    %v169 = vcvt.s32.f32 %v167
    %v170 = vcvt.s32.f32 %v168
    %v171 = vmul.f32 %v169, %v127
    %v172 = vmul.f32 %v170, %v132
    %173 = vadd.xlane.f32.xlu0 %v171
    %v174 = vpop.xlane.xlu0 %173
    %175 = vadd.xlane.f32.xlu0 %v172
    %v176 = vpop.xlane.xlu0 %175
    %v177 = vsub.f32 %v157, %v174
    %v178 = vsub.f32 %v158, %v176
    %s179 = smul.u32 0, 16
    %v180 = vlaneseq
    %v181 = vshrl.u32 %v180, 7
    %v182 = vadd.s32 %v181, 8
    %v183 = vstv %s179
    %v184 = vadd.s32 %v183, %v181
    %v185 = vadd.s32 %v183, %v182
    %vm186 = vcmp.lt.s32.totalorder %v184, 16
    %vm187 = vcmp.lt.s32.totalorder %v185, 16
    %v188 = vsel %vm186, %v177, 0.0
    %v189 = vsel %vm187, %v178, 0.0
    %vm190 = vcmask 7168
    %191 = vst.msk [vmem:[%s3] sm:$0xff] %vm190, %v188
    %192 = vst.msk [vmem:[%s3 + $0x8] sm:$0xff] %vm190, %v189
    // Predicated region
    $region14: #{tpu_custom_call.1} parent=1 // pred_check
      _
    $region15: #{tpu_custom_call.1} parent=1 // pred_check_branch
      %194 = sbr.rel (0) target = $region17
    $region16: #{tpu_custom_call.1} parent=1 // pred_region
      %s196 = ssub.s32 256, 256
      %197 = vsyncadd [#allocation4], %s196
      %s198 = sshll.u32 [#allocation5], 4
      %s199 = int_to_ptr.vmem [resolvable:$true] %s198
      %204 = dma.vmem_to_hbm [thread:$0]  %s199, 256, %s2, [#allocation4], 128, 128, 8
    $region17: #{tpu_custom_call.1} parent=1 // pred_fallthru
      _
    // Predicated region
    $region18: #{tpu_custom_call.1} parent=1 // pred_check
      _
    $region19: #{tpu_custom_call.1} parent=1 // pred_check_branch
      %206 = sbr.rel (0) target = $region21
    $region20: #{tpu_custom_call.1} parent=1 // pred_region
      _
    $region21: #{tpu_custom_call.1} parent=1 // pred_fallthru
      _
    // Predicated region
    $region22: #{tpu_custom_call.1} parent=1 // pred_check
      _
    $region23: #{tpu_custom_call.1} parent=1 // pred_check_branch
      %208 = sbr.rel (0) target = $region25
    $region24: #{tpu_custom_call.1} parent=1 // pred_region
      %209 = dma.done [#allocation4], 256
    $region25: #{tpu_custom_call.1} parent=1 // pred_fallthru
      _
    // Predicated region
    $region26: #{tpu_custom_call.1} parent=1 // pred_check
      _
    $region27: #{tpu_custom_call.1} parent=1 // pred_check_branch
      %211 = sbr.rel (0) target = $region29
    $region28: #{tpu_custom_call.1} parent=1 // pred_region
      _
    $region29: #{tpu_custom_call.1} parent=1 // pred_fallthru
      _
    %212 = vsyncpa [#allocation3], 1
    %213 = vsyncpa [#allocation4], 1

</llo_original>
